<compile_context>
chip_gen: v7x
topology: tpu7x:2x2x1
jax: 0.10.0
libtpu: 0.0.40
codegen_flags: <defaults>
</compile_context>

<pallas_src>
import numpy as np
import jax
import jax.numpy as jnp
from jax import lax
from jax.experimental import pallas as pl
from jax.experimental.pallas import tpu as pltpu
from scipy.optimize import linear_sum_assignment


# --------------------------------------------------------------------------- #
# Kernel
# --------------------------------------------------------------------------- #
def _make_matcher_kernel(weights, C, A, Qp):
    (w_cls, w_obj, w_giou, w_center, w_size, w_acls, w_areg) = weights
    del w_obj, w_acls  # folded into the wrapper-side inputs
    alpha = 0.25       # focal alpha; gamma == 2.0 hard-coded as explicit squares

    def kernel(cls_logit_ref,   # (Bt, Qp, C)    f32  semantic-class logits
               ang_lhs_ref,     # (Bt, 2Qp, A)   bf16 [-w_acls*angle_logits ; angle_resid]
               obj_ref,         # (Bt, Qp, 1)    f32  -w_obj * objectness
               center_ref,      # (Bt, Qp, Gp)   bf16
               size_ref,        # (Bt, Qp, Gp)   bf16
               giou_ref,        # (Bt, Qp, Gp)   bf16
               cls_lbl_ref,     # (Bt, 1, Gp)    i32  gt sem-cls labels (pad = -1)
               ang_lbl_ref,     # (Bt, 1, Gp)    i32  gt angle-cls labels (pad = -1)
               gt_ares_ref,     # (Bt, 1, Gp)    f32  normalized gt angle residual
               out_ref):        # (Bt, Qp, Gp)   final cost
        f32 = jnp.float32
        Gp = out_ref.shape[-1]

        # ---- focal-loss classification cost (per class, small Qp x C slab) --
        logits = cls_logit_ref[...]                       # already f32
        p = jax.nn.sigmoid(logits)
        omp = 1.0 - p
        # gamma=2.0 -> explicit squares: VALU work, no pow->exp/log on the EUP
        neg_cost = (1.0 - alpha) * (p * p) * (-jnp.log(omp + 1e-8))
        pos_cost = alpha * (omp * omp) * (-jnp.log(p + 1e-8))
        cost_per_class = pos_cost - neg_cost              # (Bt, Qp, C)

        # ---- one-hot label matrices built in-kernel --------------------------
        # w_cls folded into the (C, Gp) one-hot (exact in f32).
        cls_oh_t = (lax.broadcasted_iota(jnp.int32, (1, C, Gp), 1)
                    == cls_lbl_ref[...]).astype(f32) * w_cls        # (Bt, C, Gp)
        # Angle one-hot stays bf16 (0/1 exact) -> native bf16 MXU matmul.
        ang_oh_t = (lax.broadcasted_iota(jnp.int32, (1, A, Gp), 1)
                    == ang_lbl_ref[...]).astype(jnp.bfloat16)       # (Bt, A, Gp)

        # gather along class axis == matmul with one-hot labels (MXU)
        class_term = jnp.einsum('bqc,bcg->bqg', cost_per_class, cls_oh_t,
                                preferred_element_type=f32)          # (Bt, Qp, Gp)

        # ---- fused angle matmul (class + residual share one RHS push) --------
        fused = jnp.einsum('bqa,bag->bqg', ang_lhs_ref[...], ang_oh_t,
                           preferred_element_type=f32)               # (Bt, 2Qp, Gp)
        angle_cls_term = fused[:, :Qp, :]   # == -w_acls * gather(angle_logits)
        ares_for_gt = fused[:, Qp:, :]      # == gather(angle_resid)

        # ---- angle residual regression cost (huber, delta = 1) ---------------
        err = ares_for_gt - gt_ares_ref[...]              # (Bt,1,Gp) sublane bcast
        abs_e = jnp.abs(err)
        quad = jnp.minimum(abs_e, 1.0)
        angle_reg = 0.5 * quad * quad + (abs_e - quad)

        # ---- final combine: pairwise upcast+weight+add fused in one pass ------
        out_ref[...] = (class_term
                        + obj_ref[...]                               # -w_obj*obj
                        + w_center * center_ref[...].astype(f32)
                        + w_size * size_ref[...].astype(f32)
                        - w_giou * giou_ref[...].astype(f32)
                        + angle_cls_term
                        + w_areg * angle_reg).astype(out_ref.dtype)

    return kernel


# --------------------------------------------------------------------------- #
# VMEM-budget-aware batch blocking
# --------------------------------------------------------------------------- #
def _vmem_capacity_bytes():
    try:
        return int(pltpu.get_tpu_info().vmem_capacity_bytes)
    except Exception:
        return 64 * 1024 * 1024   # conservative (v7x per-TC)


def _per_sample_vmem_bytes(Qp, Gp, C, A, bulk_itemsize, out_itemsize):
    in_bytes = (Qp * C * 4                      # f32 sem-cls logits
                + 2 * Qp * A * bulk_itemsize    # fused angle LHS
                + Qp * 4                        # objectness
                + 3 * Qp * Gp * bulk_itemsize   # center / size / giou
                + 3 * Gp * 4)                   # labels + gt angle residual
    out_bytes = Qp * Gp * out_itemsize
    tmp_bytes = 10 * Qp * Gp * 4                # in-kernel f32 temporaries
    return 2 * (in_bytes + out_bytes) + tmp_bytes   # 2x: double-buffered pipeline


def _auto_batch_block(B, per_sample_bytes):
    budget = max(_vmem_capacity_bytes() // 2, 16 * 1024 * 1024)
    divisors = [d for d in range(1, B + 1) if B % d == 0]
    feasible = [d for d in divisors if d * per_sample_bytes <= budget] or [1]
    # Prefer >=4 grid steps (hides block-0 DMA, shrinks per-block VMEM) and
    # keep >=2 steps whenever possible so v7x can shard across its 2 TCs.
    for min_steps in (4, 2, 1):
        cand = [d for d in feasible if B // d >= min_steps]
        if cand:
            return max(cand)
    return 1


# --------------------------------------------------------------------------- #
# Wrapper
# --------------------------------------------------------------------------- #
def matcher_final_cost_pallas(sem_cls_logits, angle_logits, angle_resid_norm,
                              objectness_prob, center_dist, size_dist, gious,
                              gt_sem_cls_label, gt_angle_cls_label,
                              gt_angle_residual, *, weights,
                              bulk_dtype=jnp.bfloat16, out_dtype=jnp.float32,
                              batch_block=None):
    """Computes the (B, Q, G) assignment cost matrix with a Pallas kernel."""
    (w_cls, w_obj, w_giou, w_center, w_size, w_acls, w_areg) = weights
    del w_cls, w_giou, w_center, w_size, w_areg  # used in-kernel
    B, Q, C = sem_cls_logits.shape
    A = angle_logits.shape[-1]
    G = gt_sem_cls_label.shape[-1]
    f32 = jnp.float32

    # Lane-dense GT axis (128) and sublane-aligned query axis (16 for bf16).
    Gp = 128 * pl.cdiv(G, 128)
    Qp = 16 * pl.cdiv(Q, 16)
    pad_g, pad_q = Gp - G, Qp - Q

    # ---- input preparation (jit-fused; pad + cast in one pass per tensor) ---
    def pad_qg_cast(x):            # (B, Q, G) -> (B, Qp, Gp) bulk_dtype
        if pad_q or pad_g:
            x = jnp.pad(x, ((0, 0), (0, pad_q), (0, pad_g)))
        return x.astype(bulk_dtype)

    def pad_q_rows(x):             # (B, Q, K) -> (B, Qp, K)
        return jnp.pad(x, ((0, 0), (0, pad_q), (0, 0))) if pad_q else x

    def pad_g_cols(x, value=0):    # (B, G) -> (B, Gp)
        return (jnp.pad(x, ((0, 0), (0, pad_g)), constant_values=value)
                if pad_g else x)

    cls_logits = pad_q_rows(sem_cls_logits.astype(f32))              # (B, Qp, C) f32
    # Fused angle LHS: [-w_acls * angle_logits ; angle_resid] along Q -> one matmul.
    ang_lhs = jnp.concatenate(
        [pad_q_rows((-w_acls) * angle_logits.astype(f32)),
         pad_q_rows(angle_resid_norm.astype(f32))],
        axis=1).astype(bulk_dtype)                                   # (B, 2Qp, A)
    obj = pad_q_rows(((-w_obj) * objectness_prob.astype(f32))[..., None])  # (B, Qp, 1)
    center = pad_qg_cast(center_dist)
    size = pad_qg_cast(size_dist)
    giou = pad_qg_cast(gious)
    cls_lbl = pad_g_cols(gt_sem_cls_label.astype(jnp.int32), -1)[:, None, :]
    ang_lbl = pad_g_cols(gt_angle_cls_label.astype(jnp.int32), -1)[:, None, :]
    gt_ares = pad_g_cols(gt_angle_residual.astype(f32) / (np.pi / A))[:, None, :]

    # ---- VMEM-budget-aware batch blocking -----------------------------------
    per_sample = _per_sample_vmem_bytes(Qp, Gp, C, A,
                                        jnp.dtype(bulk_dtype).itemsize,
                                        jnp.dtype(out_dtype).itemsize)
    if batch_block is None:
        batch_block = _auto_batch_block(B, per_sample)
    assert B % batch_block == 0, "batch_block must divide batch size"
    grid_b = B // batch_block

    cp_kwargs = dict(dimension_semantics=("parallel",))
    per_block = batch_block * per_sample
    if per_block > 32 * 1024 * 1024:   # only raise above the scoped default if needed
        cp_kwargs["vmem_limit_bytes"] = int(min(per_block * 5 // 4,
                                                _vmem_capacity_bytes() * 9 // 10))

    kernel = _make_matcher_kernel(weights, C, A, Qp)

    def spec(*dims):
        nd = len(dims)
        return pl.BlockSpec((batch_block,) + dims,
                            lambda b, _nd=nd: (b,) + (0,) * _nd)

    padded = pl.pallas_call(
        kernel,
        out_shape=jax.ShapeDtypeStruct((B, Qp, Gp), out_dtype),
        grid_spec=pltpu.PrefetchScalarGridSpec(
            num_scalar_prefetch=0,
            grid=(grid_b,),
            in_specs=[
                spec(Qp, C),        # sem-cls logits (f32)
                spec(2 * Qp, A),    # fused angle LHS (bf16)
                spec(Qp, 1),        # -w_obj * objectness (f32)
                spec(Qp, Gp),       # center (bf16)
                spec(Qp, Gp),       # size (bf16)
                spec(Qp, Gp),       # giou (bf16)
                spec(1, Gp),        # gt sem-cls labels (i32)
                spec(1, Gp),        # gt angle-cls labels (i32)
                spec(1, Gp),        # gt angle residual, normalized (f32)
            ],
            out_specs=spec(Qp, Gp),
        ),
        compiler_params=pltpu.CompilerParams(**cp_kwargs),
    )(cls_logits, ang_lhs, obj, center, size, giou, cls_lbl, ang_lbl, gt_ares)

    return padded[:, :Q, :G]


_matcher_cost = jax.jit(
    matcher_final_cost_pallas,
    static_argnames=("weights", "bulk_dtype", "out_dtype", "batch_block"))


def matcher_forward(outputs, targets, weights):
    """Full Matcher.forward: Pallas cost matrix + host-side Hungarian."""
    # NOTE: 'sem_cls_prob' carries *logits* on the focal-loss branch (the
    # kernel applies sigmoid), matching the reference implementation.
    final_cost = _matcher_cost(
        outputs["sem_cls_prob"], outputs["angle_logits"],
        outputs["angle_residual_normalized"], outputs["objectness_prob"],
        outputs["center_reg_dist"], outputs["size_reg_dist"], outputs["gious"],
        targets["gt_box_sem_cls_label"], targets["gt_angle_class_label"],
        targets["gt_angle_residual_label"], weights=weights)
    final_cost_np = np.asarray(jax.block_until_ready(final_cost))

    B, Q, _ = final_cost_np.shape
    nactual_gt = np.asarray(targets["nactual_gt"])
    per_prop_gt_inds = np.zeros((B, Q), dtype=np.int64)
    proposal_matched_mask = np.zeros((B, Q), dtype=np.float32)
    assignments = []
    # Hungarian matching is sequential, data-dependent host work (matches the
    # reference, which runs scipy on .cpu().numpy()); not a kernel candidate.
    for b in range(B):
        assign = []
        if nactual_gt[b] > 0:
            rows, cols = linear_sum_assignment(final_cost_np[b, :, :nactual_gt[b]])
            assign = (rows, cols)
            per_prop_gt_inds[b, rows] = cols
            proposal_matched_mask[b, rows] = 1.0
        assignments.append(assign)
    return {"assignments": assignments,
            "per_prop_gt_inds": per_prop_gt_inds,
            "proposal_matched_mask": proposal_matched_mask,
            "final_cost": final_cost}


# --------------------------------------------------------------------------- #
# Reference & self-test
# --------------------------------------------------------------------------- #
def _reference_final_cost(outputs, targets, weights):
    """Plain-numpy reference of the focal-loss branch of Matcher.forward."""
    (w_cls, w_obj, w_giou, w_center, w_size, w_acls, w_areg) = weights
    alpha, gamma = 0.25, 2.0
    logits = np.asarray(outputs["sem_cls_prob"], np.float64)
    B, Q, C = logits.shape
    labels = np.asarray(targets["gt_box_sem_cls_label"])
    p = 1.0 / (1.0 + np.exp(-logits))
    neg = (1 - alpha) * p ** gamma * -np.log(1 - p + 1e-8)
    pos = alpha * (1 - p) ** gamma * -np.log(p + 1e-8)
    cost_c = pos - neg
    class_mat = np.take_along_axis(cost_c, labels[:, None, :].repeat(Q, 1), 2)

    ang_logits = np.asarray(outputs["angle_logits"], np.float64)
    ang_labels = np.asarray(targets["gt_angle_class_label"])
    angle_class_mat = -np.take_along_axis(ang_logits,
                                          ang_labels[:, None, :].repeat(Q, 1), 2)

    ares = np.asarray(outputs["angle_residual_normalized"], np.float64)
    A = ares.shape[-1]
    gt_ares_norm = np.asarray(targets["gt_angle_residual_label"]) / (np.pi / A)
    oh = np.eye(A)[ang_labels]                                 # (B, G, A)
    ares_gt = np.einsum("bqa,bga->bqg", ares, oh)
    err = ares_gt - gt_ares_norm[:, None, :]
    abs_e = np.abs(err)
    quad = np.minimum(abs_e, 1.0)
    angle_reg_mat = 0.5 * quad ** 2 + (abs_e - quad)

    objectness_mat = -np.asarray(outputs["objectness_prob"])[:, :, None]
    center_mat = np.asarray(outputs["center_reg_dist"])
    size_mat = np.asarray(outputs["size_reg_dist"])
    giou_mat = -np.asarray(outputs["gious"])
    return (w_cls * class_mat + w_obj * objectness_mat + w_center * center_mat
            + w_giou * giou_mat + w_size * size_mat + w_acls * angle_class_mat
            + w_areg * angle_reg_mat)


if __name__ == "__main__":
    B, Q, G, C, A = 2, 16, 8, 20, 12   # batch, queries, gt boxes, sem classes, angle bins
    key = jax.random.PRNGKey(0)
    ks = jax.random.split(key, 10)

    outputs = {
        "sem_cls_prob": jax.random.normal(ks[0], (B, Q, C), jnp.float32),   # logits (focalloss branch)
        "angle_logits": jax.random.normal(ks[1], (B, Q, A), jnp.float32),
        "angle_residual_normalized": 0.5 * jax.random.normal(ks[2], (B, Q, A), jnp.float32),
        "objectness_prob": jax.random.uniform(ks[3], (B, Q), jnp.float32),
        "center_reg_dist": jnp.abs(jax.random.normal(ks[4], (B, Q, G), jnp.float32)),
        "size_reg_dist": jnp.abs(jax.random.normal(ks[5], (B, Q, G), jnp.float32)),
        "gious": jax.random.uniform(ks[6], (B, Q, G), jnp.float32, minval=-1.0, maxval=1.0),
    }
    targets = {
        "gt_box_sem_cls_label": jax.random.randint(ks[7], (B, G), 0, C),
        "gt_angle_class_label": jax.random.randint(ks[8], (B, G), 0, A),
        "gt_angle_residual_label": 0.2 * jax.random.normal(ks[9], (B, G), jnp.float32),
        "nactual_gt": jnp.array([G, G - 3], dtype=jnp.int32),
    }

    # Deterministic constructor args (cls_loss='focalloss_...'):
    #   cost_class, cost_objectness, cost_giou, cost_center, cost_size,
    #   matcher_anglecls_cost, matcher_anglereg_cost
    weights = (1.0, 5.0, 2.0, 5.0, 1.0, 0.1, 0.5)

    result = matcher_forward(outputs, targets, weights)
    jax.block_until_ready(result["final_cost"])

    # Reference check: mirror exactly the quantization the kernel boundary
    # applies so the assert checks kernel math, not bf16 input rounding:
    #   * center/size/giou and angle_residual cross the boundary as bf16;
    #   * angle_logits cross pre-scaled by -w_acls and cast to bf16;
    #   * sem-cls logits and objectness stay f32 (no round-trip).
    def _rt(x):
        return np.asarray(jnp.asarray(x, jnp.bfloat16).astype(jnp.float32))

    outputs_ref = dict(outputs)
    for k in ("angle_residual_normalized", "center_reg_dist", "size_reg_dist", "gious"):
        outputs_ref[k] = _rt(outputs[k])
    w_acls = weights[5]
    outputs_ref["angle_logits"] = _rt(-w_acls * np.asarray(outputs["angle_logits"])) / (-w_acls)

    ref = _reference_final_cost(outputs_ref, targets, weights)
    np.testing.assert_allclose(np.asarray(result["final_cost"]), ref,
                               rtol=1e-3, atol=1e-3)
    assert result["per_prop_gt_inds"].shape == (B, Q)
    assert result["proposal_matched_mask"].shape == (B, Q)
    print("KERNEL_OK")
</pallas_src>

<mosaic_0001>
module attributes {stable_mosaic.version = 11 : i64} {
  func.func @kernel(%arg0: i32, %arg1: memref<1x16x20xf32, #tpu.memory_space<vmem>>, %arg2: memref<1x32x12xbf16, #tpu.memory_space<vmem>>, %arg3: memref<1x16x1xf32, #tpu.memory_space<vmem>>, %arg4: memref<1x16x128xbf16, #tpu.memory_space<vmem>>, %arg5: memref<1x16x128xbf16, #tpu.memory_space<vmem>>, %arg6: memref<1x16x128xbf16, #tpu.memory_space<vmem>>, %arg7: memref<1x1x128xi32, #tpu.memory_space<vmem>>, %arg8: memref<1x1x128xi32, #tpu.memory_space<vmem>>, %arg9: memref<1x1x128xf32, #tpu.memory_space<vmem>>, %arg10: memref<1x16x128xf32, #tpu.memory_space<vmem>>) attributes {dimension_semantics = [#tpu.dimension_semantics<parallel>], iteration_bounds = array<i64: 2>, scalar_prefetch = 0 : i64, scratch_operands = 0 : i64, tpu.core_type = #tpu.core_type<tc>, window_params = [{transform_indices = @transform_0, window_bounds = array<i64: 1, 16, 20>}, {transform_indices = @transform_1, window_bounds = array<i64: 1, 32, 12>}, {transform_indices = @transform_2, window_bounds = array<i64: 1, 16, 1>}, {transform_indices = @transform_3, window_bounds = array<i64: 1, 16, 128>}, {transform_indices = @transform_4, window_bounds = array<i64: 1, 16, 128>}, {transform_indices = @transform_5, window_bounds = array<i64: 1, 16, 128>}, {transform_indices = @transform_6, window_bounds = array<i64: 1, 1, 128>}, {transform_indices = @transform_7, window_bounds = array<i64: 1, 1, 128>}, {transform_indices = @transform_8, window_bounds = array<i64: 1, 1, 128>}, {transform_indices = @transform_9, window_bounds = array<i64: 1, 16, 128>}]} {
    %c0 = arith.constant 0 : index
    %c0_0 = arith.constant 0 : index
    %c0_1 = arith.constant 0 : index
    %0 = vector.load %arg1[%c0, %c0_0, %c0_1] : memref<1x16x20xf32, #tpu.memory_space<vmem>>, vector<1x16x20xf32>
    %1 = arith.negf %0 : vector<1x16x20xf32>
    %2 = math.exp %1 : vector<1x16x20xf32>
    %cst = arith.constant 1.000000e+00 : f32
    %3 = vector.broadcast %cst : f32 to vector<1x16x20xf32>
    %4 = arith.addf %3, %2 : vector<1x16x20xf32>
    %5 = arith.divf %3, %4 : vector<1x16x20xf32>
    %cst_2 = arith.constant 1.000000e+00 : f32
    %6 = vector.broadcast %cst_2 : f32 to vector<1x16x20xf32>
    %7 = arith.subf %6, %5 : vector<1x16x20xf32>
    %8 = arith.mulf %5, %5 : vector<1x16x20xf32>
    %cst_3 = arith.constant 7.500000e-01 : f32
    %9 = vector.broadcast %cst_3 : f32 to vector<1x16x20xf32>
    %10 = arith.mulf %9, %8 : vector<1x16x20xf32>
    %cst_4 = arith.constant 9.99999993E-9 : f32
    %11 = vector.broadcast %cst_4 : f32 to vector<1x16x20xf32>
    %12 = arith.addf %7, %11 : vector<1x16x20xf32>
    %13 = math.log %12 : vector<1x16x20xf32>
    %cst_5 = arith.constant 0.000000e+00 : f32
    %14 = vector.broadcast %cst_5 : f32 to vector<1x16x20xf32>
    %15 = arith.subf %14, %13 : vector<1x16x20xf32>
    %16 = arith.mulf %10, %15 : vector<1x16x20xf32>
    %17 = arith.mulf %7, %7 : vector<1x16x20xf32>
    %cst_6 = arith.constant 2.500000e-01 : f32
    %18 = vector.broadcast %cst_6 : f32 to vector<1x16x20xf32>
    %19 = arith.mulf %18, %17 : vector<1x16x20xf32>
    %cst_7 = arith.constant 9.99999993E-9 : f32
    %20 = vector.broadcast %cst_7 : f32 to vector<1x16x20xf32>
    %21 = arith.addf %5, %20 : vector<1x16x20xf32>
    %22 = math.log %21 : vector<1x16x20xf32>
    %cst_8 = arith.constant 0.000000e+00 : f32
    %23 = vector.broadcast %cst_8 : f32 to vector<1x16x20xf32>
    %24 = arith.subf %23, %22 : vector<1x16x20xf32>
    %25 = arith.mulf %19, %24 : vector<1x16x20xf32>
    %26 = arith.subf %25, %16 : vector<1x16x20xf32>
    %27 = tpu.iota {dimensions = array<i32: 1>} : vector<1x20x128xi32>
    %c0_9 = arith.constant 0 : index
    %c0_10 = arith.constant 0 : index
    %c0_11 = arith.constant 0 : index
    %28 = vector.load %arg7[%c0_9, %c0_10, %c0_11] : memref<1x1x128xi32, #tpu.memory_space<vmem>>, vector<1x1x128xi32>
    %29 = vector.broadcast %28 : vector<1x1x128xi32> to vector<1x20x128xi32>
    %30 = arith.cmpi eq, %27, %29 : vector<1x20x128xi32>
    %31 = arith.extui %30 : vector<1x20x128xi1> to vector<1x20x128xi32>
    %32 = arith.sitofp %31 : vector<1x20x128xi32> to vector<1x20x128xf32>
    %cst_12 = arith.constant 1.000000e+00 : f32
    %33 = vector.broadcast %cst_12 : f32 to vector<1x20x128xf32>
    %34 = arith.mulf %32, %33 : vector<1x20x128xf32>
    %35 = tpu.iota {dimensions = array<i32: 1>} : vector<1x12x128xi32>
    %c0_13 = arith.constant 0 : index
    %c0_14 = arith.constant 0 : index
    %c0_15 = arith.constant 0 : index
    %36 = vector.load %arg8[%c0_13, %c0_14, %c0_15] : memref<1x1x128xi32, #tpu.memory_space<vmem>>, vector<1x1x128xi32>
    %37 = vector.broadcast %36 : vector<1x1x128xi32> to vector<1x12x128xi32>
    %38 = arith.cmpi eq, %35, %37 : vector<1x12x128xi32>
    %39 = arith.extui %38 : vector<1x12x128xi1> to vector<1x12x128xi32>
    %40 = arith.sitofp %39 : vector<1x12x128xi32> to vector<1x12x128xf32>
    %41 = arith.truncf %40 : vector<1x12x128xf32> to vector<1x12x128xbf16>
    "tpu.trace_start"() <{level = 10 : i32, message = "bqc,bcg->bqg"}> : () -> ()
    %cst_16 = arith.constant dense<0.000000e+00> : vector<1x16x128xf32>
    %42 = tpu.matmul %26, %34, %cst_16 {dimension_numbers = #tpu.dot_dimension_numbers<[2], [1], [1], [2], [0, 0, 0, 1, 1, 2], [0], [0]>} : vector<1x16x20xf32>, vector<1x20x128xf32>, vector<1x16x128xf32> -> vector<1x16x128xf32>
    "tpu.trace_stop"() : () -> ()
    %c0_17 = arith.constant 0 : index
    %c0_18 = arith.constant 0 : index
    %c0_19 = arith.constant 0 : index
    %43 = vector.load %arg2[%c0_17, %c0_18, %c0_19] : memref<1x32x12xbf16, #tpu.memory_space<vmem>>, vector<1x32x12xbf16>
    "tpu.trace_start"() <{level = 10 : i32, message = "bqa,bag->bqg"}> : () -> ()
    %cst_20 = arith.constant dense<0.000000e+00> : vector<1x32x128xf32>
    %44 = tpu.matmul %43, %41, %cst_20 {dimension_numbers = #tpu.dot_dimension_numbers<[2], [1], [1], [2], [0, 0, 0, 1, 1, 2], [0], [0]>} : vector<1x32x12xbf16>, vector<1x12x128xbf16>, vector<1x32x128xf32> -> vector<1x32x128xf32>
    "tpu.trace_stop"() : () -> ()
    %45 = vector.extract_strided_slice %44 {offsets = [0, 0, 0], sizes = [1, 16, 128], strides = [1, 1, 1]} : vector<1x32x128xf32> to vector<1x16x128xf32>
    %46 = vector.extract_strided_slice %44 {offsets = [0, 16, 0], sizes = [1, 16, 128], strides = [1, 1, 1]} : vector<1x32x128xf32> to vector<1x16x128xf32>
    %c0_21 = arith.constant 0 : index
    %c0_22 = arith.constant 0 : index
    %c0_23 = arith.constant 0 : index
    %47 = vector.load %arg9[%c0_21, %c0_22, %c0_23] : memref<1x1x128xf32, #tpu.memory_space<vmem>>, vector<1x1x128xf32>
    %48 = vector.broadcast %47 : vector<1x1x128xf32> to vector<1x16x128xf32>
    %49 = arith.subf %46, %48 : vector<1x16x128xf32>
    %50 = math.absf %49 : vector<1x16x128xf32>
    %cst_24 = arith.constant 1.000000e+00 : f32
    %51 = vector.broadcast %cst_24 : f32 to vector<1x16x128xf32>
    %52 = arith.minimumf %50, %51 : vector<1x16x128xf32>
    %cst_25 = arith.constant 5.000000e-01 : f32
    %53 = vector.broadcast %cst_25 : f32 to vector<1x16x128xf32>
    %54 = arith.mulf %53, %52 : vector<1x16x128xf32>
    %55 = arith.mulf %54, %52 : vector<1x16x128xf32>
    %56 = arith.subf %50, %52 : vector<1x16x128xf32>
    %57 = arith.addf %55, %56 : vector<1x16x128xf32>
    %c0_26 = arith.constant 0 : index
    %c0_27 = arith.constant 0 : index
    %c0_28 = arith.constant 0 : index
    %58 = vector.load %arg3[%c0_26, %c0_27, %c0_28] : memref<1x16x1xf32, #tpu.memory_space<vmem>>, vector<1x16x1xf32>
    %59 = vector.broadcast %58 : vector<1x16x1xf32> to vector<1x16x128xf32>
    %60 = arith.addf %42, %59 : vector<1x16x128xf32>
    %c0_29 = arith.constant 0 : index
    %c0_30 = arith.constant 0 : index
    %c0_31 = arith.constant 0 : index
    %61 = vector.load %arg4[%c0_29, %c0_30, %c0_31] : memref<1x16x128xbf16, #tpu.memory_space<vmem>>, vector<1x16x128xbf16>
    %62 = arith.extf %61 : vector<1x16x128xbf16> to vector<1x16x128xf32>
    %cst_32 = arith.constant 5.000000e+00 : f32
    %63 = vector.broadcast %cst_32 : f32 to vector<1x16x128xf32>
    %64 = arith.mulf %63, %62 : vector<1x16x128xf32>
    %65 = arith.addf %60, %64 : vector<1x16x128xf32>
    %c0_33 = arith.constant 0 : index
    %c0_34 = arith.constant 0 : index
    %c0_35 = arith.constant 0 : index
    %66 = vector.load %arg5[%c0_33, %c0_34, %c0_35] : memref<1x16x128xbf16, #tpu.memory_space<vmem>>, vector<1x16x128xbf16>
    %67 = arith.extf %66 : vector<1x16x128xbf16> to vector<1x16x128xf32>
    %cst_36 = arith.constant 1.000000e+00 : f32
    %68 = vector.broadcast %cst_36 : f32 to vector<1x16x128xf32>
    %69 = arith.mulf %68, %67 : vector<1x16x128xf32>
    %70 = arith.addf %65, %69 : vector<1x16x128xf32>
    %c0_37 = arith.constant 0 : index
    %c0_38 = arith.constant 0 : index
    %c0_39 = arith.constant 0 : index
    %71 = vector.load %arg6[%c0_37, %c0_38, %c0_39] : memref<1x16x128xbf16, #tpu.memory_space<vmem>>, vector<1x16x128xbf16>
    %72 = arith.extf %71 : vector<1x16x128xbf16> to vector<1x16x128xf32>
    %cst_40 = arith.constant 2.000000e+00 : f32
    %73 = vector.broadcast %cst_40 : f32 to vector<1x16x128xf32>
    %74 = arith.mulf %73, %72 : vector<1x16x128xf32>
    %75 = arith.subf %70, %74 : vector<1x16x128xf32>
    %76 = arith.addf %75, %45 : vector<1x16x128xf32>
    %cst_41 = arith.constant 5.000000e-01 : f32
    %77 = vector.broadcast %cst_41 : f32 to vector<1x16x128xf32>
    %78 = arith.mulf %77, %57 : vector<1x16x128xf32>
    %79 = arith.addf %76, %78 : vector<1x16x128xf32>
    %c0_42 = arith.constant 0 : index
    %c0_43 = arith.constant 0 : index
    %c0_44 = arith.constant 0 : index
    %80 = vector.load %arg10[%c0_42, %c0_43, %c0_44] : memref<1x16x128xf32, #tpu.memory_space<vmem>>, vector<1x16x128xf32>
    tpu.vector_store %arg10[%c0_42, %c0_43, %c0_44], %79 {strides = array<i32>} : memref<1x16x128xf32, #tpu.memory_space<vmem>>, vector<1x16x128xf32>,
    return
  }
  func.func @transform_0(%arg0: i32) -> (i32, i32, i32) {
    %c0_i32 = arith.constant 0 : i32
    %c0_i32_0 = arith.constant 0 : i32
    %c0_i32_1 = arith.constant 0 : i32
    return %arg0, %c0_i32, %c0_i32_0 : i32, i32, i32
  }
  func.func @transform_1(%arg0: i32) -> (i32, i32, i32) {
    %c0_i32 = arith.constant 0 : i32
    %c0_i32_0 = arith.constant 0 : i32
    %c0_i32_1 = arith.constant 0 : i32
    return %arg0, %c0_i32, %c0_i32_0 : i32, i32, i32
  }
  func.func @transform_2(%arg0: i32) -> (i32, i32, i32) {
    %c0_i32 = arith.constant 0 : i32
    %c0_i32_0 = arith.constant 0 : i32
    %c0_i32_1 = arith.constant 0 : i32
    return %arg0, %c0_i32, %c0_i32_0 : i32, i32, i32
  }
  func.func @transform_3(%arg0: i32) -> (i32, i32, i32) {
    %c0_i32 = arith.constant 0 : i32
    %c0_i32_0 = arith.constant 0 : i32
    %c0_i32_1 = arith.constant 0 : i32
    return %arg0, %c0_i32, %c0_i32_0 : i32, i32, i32
  }
  func.func @transform_4(%arg0: i32) -> (i32, i32, i32) {
    %c0_i32 = arith.constant 0 : i32
    %c0_i32_0 = arith.constant 0 : i32
    %c0_i32_1 = arith.constant 0 : i32
    return %arg0, %c0_i32, %c0_i32_0 : i32, i32, i32
  }
  func.func @transform_5(%arg0: i32) -> (i32, i32, i32) {
    %c0_i32 = arith.constant 0 : i32
    %c0_i32_0 = arith.constant 0 : i32
    %c0_i32_1 = arith.constant 0 : i32
    return %arg0, %c0_i32, %c0_i32_0 : i32, i32, i32
  }
  func.func @transform_6(%arg0: i32) -> (i32, i32, i32) {
    %c0_i32 = arith.constant 0 : i32
    %c0_i32_0 = arith.constant 0 : i32
    %c0_i32_1 = arith.constant 0 : i32
    return %arg0, %c0_i32, %c0_i32_0 : i32, i32, i32
  }
  func.func @transform_7(%arg0: i32) -> (i32, i32, i32) {
    %c0_i32 = arith.constant 0 : i32
    %c0_i32_0 = arith.constant 0 : i32
    %c0_i32_1 = arith.constant 0 : i32
    return %arg0, %c0_i32, %c0_i32_0 : i32, i32, i32
  }
  func.func @transform_8(%arg0: i32) -> (i32, i32, i32) {
    %c0_i32 = arith.constant 0 : i32
    %c0_i32_0 = arith.constant 0 : i32
    %c0_i32_1 = arith.constant 0 : i32
    return %arg0, %c0_i32, %c0_i32_0 : i32, i32, i32
  }
  func.func @transform_9(%arg0: i32) -> (i32, i32, i32) {
    %c0_i32 = arith.constant 0 : i32
    %c0_i32_0 = arith.constant 0 : i32
    %c0_i32_1 = arith.constant 0 : i32
    return %arg0, %c0_i32, %c0_i32_0 : i32, i32, i32
  }
}

</mosaic_0001>

<llo_original>
// kernel: matcher_final_cost_pallas.1
$region0: #{matcher_final_cost_pallas.1}
  #allocation0 [shape = 'u32[]', space=smem, size = 0x4, offset = 0x4, fixed_abs, tag = 'smem constant byte address 0x4 - core index']
  #allocation1 [shape = 'u32[144,128]{1,0:T(1,128)}', space=vmem, size = 0x12000, scoped, tag = 'internal scratch']
  %s0 = inlined_call_operand.vmem [shape: f32[2,16,20], index: 0, kind: input, shape index: {}]
  %s1 = inlined_call_operand.vmem [shape: bf16[2,32,12], index: 1, kind: input, shape index: {}]
  %s2 = inlined_call_operand.vmem [shape: f32[2,16,1], index: 2, kind: input, shape index: {}]
  %s3 = inlined_call_operand.vmem [shape: bf16[2,16,128], index: 3, kind: input, shape index: {}]
  %s4 = inlined_call_operand.vmem [shape: bf16[2,16,128], index: 4, kind: input, shape index: {}]
  %s5 = inlined_call_operand.vmem [shape: bf16[2,16,128], index: 5, kind: input, shape index: {}]
  %s6 = inlined_call_operand.vmem [shape: s32[2,1,128], index: 6, kind: input, shape index: {}]
  %s7 = inlined_call_operand.vmem [shape: s32[2,1,128], index: 7, kind: input, shape index: {}]
  %s8 = inlined_call_operand.vmem [shape: f32[2,1,128], index: 8, kind: input, shape index: {}]
  %s9 = inlined_call_operand.vmem [shape: f32[2,16,128], index: 9, kind: output, shape index: {}]
  %s10 = sld [smem:[#allocation0]]
  $region69: #{matcher_final_cost_pallas.1} parent=0
    _
  %s12 = ssub.s32 1, %s10
  %s13 = scalar_select 0, %s12, %s10
  loop: start=0, step=1, limit=4
  $region2: #{matcher_final_cost_pallas.1} parent=0 // loop_pre_header
    _
  $region3: #{matcher_final_cost_pallas.1} parent=0 // loop_header
    %s15 = sphi 0, %s19
    %p16 = scmp.ge.s32.totalorder %s15, 4
    %s25 = sphi 0, %s27
    %s28 = sphi 0, %s25
    %s29 = sphi 0, %s28
    %s45 = sphi 0, %s29
    %s51 = sphi 0, %s53
    %s54 = sphi 0, %s51
    %s55 = sphi 0, %s54
    %s71 = sphi 0, %s55
    %s77 = sphi 0, %s79
    %s80 = sphi 0, %s77
    %s81 = sphi 0, %s80
    %s97 = sphi 0, %s81
    %s103 = sphi 0, %s105
    %s106 = sphi 0, %s103
    %s107 = sphi 0, %s106
    %s123 = sphi 0, %s107
    %s129 = sphi 0, %s131
    %s132 = sphi 0, %s129
    %s133 = sphi 0, %s132
    %s149 = sphi 0, %s133
    %s155 = sphi 0, %s157
    %s158 = sphi 0, %s155
    %s159 = sphi 0, %s158
    %s175 = sphi 0, %s159
    %s181 = sphi 0, %s183
    %s184 = sphi 0, %s181
    %s185 = sphi 0, %s184
    %s201 = sphi 0, %s185
    %s207 = sphi 0, %s209
    %s210 = sphi 0, %s207
    %s211 = sphi 0, %s210
    %s227 = sphi 0, %s211
    %s233 = sphi 0, %s235
    %s236 = sphi 0, %s233
    %s237 = sphi 0, %s236
    %s253 = sphi 0, %s237
    %s259 = sphi 0, %s261
    %s262 = sphi 0, %s259
    %s263 = sphi 0, %s262
    %s279 = sphi 0, %s263
  $region4: #{matcher_final_cost_pallas.1} parent=0 // loop_header_branch
    %18 = sbr.rel (%p16) target = $region8
  $region5: #{matcher_final_cost_pallas.1} parent=0 // loop_body
    %s20 = ssub.s32 %s15, 1
    %s21 = ssub.s32 %s15, 2
    %s22 = sadd.s32 %s15, 1
    %s23 = ssub.s32 %s15, %s22
    %p24 = scmp.eq.s32.totalorder %s23, 0
    %s26 = sadd.s32 %s25, 1
    %s27 = scalar_select %p24, %s25, %s26
    %p30 = pneg %p24
    %p31 = scmp.eq.s32.totalorder %s15, 1
    %p32 = por %p30, %p31
    %p33 = scmp.ne.s32.totalorder %s25, %s28
    %p34 = scmp.eq.s32.totalorder %s15, 0
    %p35 = por %p33, %p34
    %p36 = scmp.ne.s32.totalorder %s25, %s28
    %p37 = scmp.eq.s32.totalorder %s20, 1
    %p38 = por %p36, %p37
    %p39 = scmp.ne.s32.totalorder %s28, %s29
    %p40 = scmp.eq.s32.totalorder %s20, 0
    %p41 = por %p39, %p40
    %p42 = scmp.ne.s32.totalorder %s28, %s29
    %p43 = scmp.eq.s32.totalorder %s21, 1
    %p44 = por %p42, %p43
    %p46 = scmp.ne.s32.totalorder %s29, %s45
    %p47 = scmp.eq.s32.totalorder %s21, 0
    %p48 = por %p46, %p47
    %s49 = ssub.s32 %s15, %s22
    %p50 = scmp.eq.s32.totalorder %s49, 0
    %s52 = sadd.s32 %s51, 1
    %s53 = scalar_select %p50, %s51, %s52
    %p56 = pneg %p50
    %p57 = scmp.eq.s32.totalorder %s15, 1
    %p58 = por %p56, %p57
    %p59 = scmp.ne.s32.totalorder %s51, %s54
    %p60 = scmp.eq.s32.totalorder %s15, 0
    %p61 = por %p59, %p60
    %p62 = scmp.ne.s32.totalorder %s51, %s54
    %p63 = scmp.eq.s32.totalorder %s20, 1
    %p64 = por %p62, %p63
    %p65 = scmp.ne.s32.totalorder %s54, %s55
    %p66 = scmp.eq.s32.totalorder %s20, 0
    %p67 = por %p65, %p66
    %p68 = scmp.ne.s32.totalorder %s54, %s55
    %p69 = scmp.eq.s32.totalorder %s21, 1
    %p70 = por %p68, %p69
    %p72 = scmp.ne.s32.totalorder %s55, %s71
    %p73 = scmp.eq.s32.totalorder %s21, 0
    %p74 = por %p72, %p73
    %s75 = ssub.s32 %s15, %s22
    %p76 = scmp.eq.s32.totalorder %s75, 0
    %s78 = sadd.s32 %s77, 1
    %s79 = scalar_select %p76, %s77, %s78
    %p82 = pneg %p76
    %p83 = scmp.eq.s32.totalorder %s15, 1
    %p84 = por %p82, %p83
    %p85 = scmp.ne.s32.totalorder %s77, %s80
    %p86 = scmp.eq.s32.totalorder %s15, 0
    %p87 = por %p85, %p86
    %p88 = scmp.ne.s32.totalorder %s77, %s80
    %p89 = scmp.eq.s32.totalorder %s20, 1
    %p90 = por %p88, %p89
    %p91 = scmp.ne.s32.totalorder %s80, %s81
    %p92 = scmp.eq.s32.totalorder %s20, 0
    %p93 = por %p91, %p92
    %p94 = scmp.ne.s32.totalorder %s80, %s81
    %p95 = scmp.eq.s32.totalorder %s21, 1
    %p96 = por %p94, %p95
    %p98 = scmp.ne.s32.totalorder %s81, %s97
    %p99 = scmp.eq.s32.totalorder %s21, 0
    %p100 = por %p98, %p99
    %s101 = ssub.s32 %s15, %s22
    %p102 = scmp.eq.s32.totalorder %s101, 0
    %s104 = sadd.s32 %s103, 1
    %s105 = scalar_select %p102, %s103, %s104
    %p108 = pneg %p102
    %p109 = scmp.eq.s32.totalorder %s15, 1
    %p110 = por %p108, %p109
    %p111 = scmp.ne.s32.totalorder %s103, %s106
    %p112 = scmp.eq.s32.totalorder %s15, 0
    %p113 = por %p111, %p112
    %p114 = scmp.ne.s32.totalorder %s103, %s106
    %p115 = scmp.eq.s32.totalorder %s20, 1
    %p116 = por %p114, %p115
    %p117 = scmp.ne.s32.totalorder %s106, %s107
    %p118 = scmp.eq.s32.totalorder %s20, 0
    %p119 = por %p117, %p118
    %p120 = scmp.ne.s32.totalorder %s106, %s107
    %p121 = scmp.eq.s32.totalorder %s21, 1
    %p122 = por %p120, %p121
    %p124 = scmp.ne.s32.totalorder %s107, %s123
    %p125 = scmp.eq.s32.totalorder %s21, 0
    %p126 = por %p124, %p125
    %s127 = ssub.s32 %s15, %s22
    %p128 = scmp.eq.s32.totalorder %s127, 0
    %s130 = sadd.s32 %s129, 1
    %s131 = scalar_select %p128, %s129, %s130
    %p134 = pneg %p128
    %p135 = scmp.eq.s32.totalorder %s15, 1
    %p136 = por %p134, %p135
    %p137 = scmp.ne.s32.totalorder %s129, %s132
    %p138 = scmp.eq.s32.totalorder %s15, 0
    %p139 = por %p137, %p138
    %p140 = scmp.ne.s32.totalorder %s129, %s132
    %p141 = scmp.eq.s32.totalorder %s20, 1
    %p142 = por %p140, %p141
    %p143 = scmp.ne.s32.totalorder %s132, %s133
    %p144 = scmp.eq.s32.totalorder %s20, 0
    %p145 = por %p143, %p144
    %p146 = scmp.ne.s32.totalorder %s132, %s133
    %p147 = scmp.eq.s32.totalorder %s21, 1
    %p148 = por %p146, %p147
    %p150 = scmp.ne.s32.totalorder %s133, %s149
    %p151 = scmp.eq.s32.totalorder %s21, 0
    %p152 = por %p150, %p151
    %s153 = ssub.s32 %s15, %s22
    %p154 = scmp.eq.s32.totalorder %s153, 0
    %s156 = sadd.s32 %s155, 1
    %s157 = scalar_select %p154, %s155, %s156
    %p160 = pneg %p154
    %p161 = scmp.eq.s32.totalorder %s15, 1
    %p162 = por %p160, %p161
    %p163 = scmp.ne.s32.totalorder %s155, %s158
    %p164 = scmp.eq.s32.totalorder %s15, 0
    %p165 = por %p163, %p164
    %p166 = scmp.ne.s32.totalorder %s155, %s158
    %p167 = scmp.eq.s32.totalorder %s20, 1
    %p168 = por %p166, %p167
    %p169 = scmp.ne.s32.totalorder %s158, %s159
    %p170 = scmp.eq.s32.totalorder %s20, 0
    %p171 = por %p169, %p170
    %p172 = scmp.ne.s32.totalorder %s158, %s159
    %p173 = scmp.eq.s32.totalorder %s21, 1
    %p174 = por %p172, %p173
    %p176 = scmp.ne.s32.totalorder %s159, %s175
    %p177 = scmp.eq.s32.totalorder %s21, 0
    %p178 = por %p176, %p177
    %s179 = ssub.s32 %s15, %s22
    %p180 = scmp.eq.s32.totalorder %s179, 0
    %s182 = sadd.s32 %s181, 1
    %s183 = scalar_select %p180, %s181, %s182
    %p186 = pneg %p180
    %p187 = scmp.eq.s32.totalorder %s15, 1
    %p188 = por %p186, %p187
    %p189 = scmp.ne.s32.totalorder %s181, %s184
    %p190 = scmp.eq.s32.totalorder %s15, 0
    %p191 = por %p189, %p190
    %p192 = scmp.ne.s32.totalorder %s181, %s184
    %p193 = scmp.eq.s32.totalorder %s20, 1
    %p194 = por %p192, %p193
    %p195 = scmp.ne.s32.totalorder %s184, %s185
    %p196 = scmp.eq.s32.totalorder %s20, 0
    %p197 = por %p195, %p196
    %p198 = scmp.ne.s32.totalorder %s184, %s185
    %p199 = scmp.eq.s32.totalorder %s21, 1
    %p200 = por %p198, %p199
    %p202 = scmp.ne.s32.totalorder %s185, %s201
    %p203 = scmp.eq.s32.totalorder %s21, 0
    %p204 = por %p202, %p203
    %s205 = ssub.s32 %s15, %s22
    %p206 = scmp.eq.s32.totalorder %s205, 0
    %s208 = sadd.s32 %s207, 1
    %s209 = scalar_select %p206, %s207, %s208
    %p212 = pneg %p206
    %p213 = scmp.eq.s32.totalorder %s15, 1
    %p214 = por %p212, %p213
    %p215 = scmp.ne.s32.totalorder %s207, %s210
    %p216 = scmp.eq.s32.totalorder %s15, 0
    %p217 = por %p215, %p216
    %p218 = scmp.ne.s32.totalorder %s207, %s210
    %p219 = scmp.eq.s32.totalorder %s20, 1
    %p220 = por %p218, %p219
    %p221 = scmp.ne.s32.totalorder %s210, %s211
    %p222 = scmp.eq.s32.totalorder %s20, 0
    %p223 = por %p221, %p222
    %p224 = scmp.ne.s32.totalorder %s210, %s211
    %p225 = scmp.eq.s32.totalorder %s21, 1
    %p226 = por %p224, %p225
    %p228 = scmp.ne.s32.totalorder %s211, %s227
    %p229 = scmp.eq.s32.totalorder %s21, 0
    %p230 = por %p228, %p229
    %s231 = ssub.s32 %s15, %s22
    %p232 = scmp.eq.s32.totalorder %s231, 0
    %s234 = sadd.s32 %s233, 1
    %s235 = scalar_select %p232, %s233, %s234
    %p238 = pneg %p232
    %p239 = scmp.eq.s32.totalorder %s15, 1
    %p240 = por %p238, %p239
    %p241 = scmp.ne.s32.totalorder %s233, %s236
    %p242 = scmp.eq.s32.totalorder %s15, 0
    %p243 = por %p241, %p242
    %p244 = scmp.ne.s32.totalorder %s233, %s236
    %p245 = scmp.eq.s32.totalorder %s20, 1
    %p246 = por %p244, %p245
    %p247 = scmp.ne.s32.totalorder %s236, %s237
    %p248 = scmp.eq.s32.totalorder %s20, 0
    %p249 = por %p247, %p248
    %p250 = scmp.ne.s32.totalorder %s236, %s237
    %p251 = scmp.eq.s32.totalorder %s21, 1
    %p252 = por %p250, %p251
    %p254 = scmp.ne.s32.totalorder %s237, %s253
    %p255 = scmp.eq.s32.totalorder %s21, 0
    %p256 = por %p254, %p255
    %s257 = ssub.s32 %s15, %s22
    %p258 = scmp.eq.s32.totalorder %s257, 0
    %s260 = sadd.s32 %s259, 1
    %s261 = scalar_select %p258, %s259, %s260
    %p264 = pneg %p258
    %p265 = scmp.eq.s32.totalorder %s15, 1
    %p266 = por %p264, %p265
    %p267 = scmp.ne.s32.totalorder %s259, %s262
    %p268 = scmp.eq.s32.totalorder %s15, 0
    %p269 = por %p267, %p268
    %p270 = scmp.ne.s32.totalorder %s259, %s262
    %p271 = scmp.eq.s32.totalorder %s20, 1
    %p272 = por %p270, %p271
    %p273 = scmp.ne.s32.totalorder %s262, %s263
    %p274 = scmp.eq.s32.totalorder %s20, 0
    %p275 = por %p273, %p274
    %p276 = scmp.ne.s32.totalorder %s262, %s263
    %p277 = scmp.eq.s32.totalorder %s21, 1
    %p278 = por %p276, %p277
    %p280 = scmp.ne.s32.totalorder %s263, %s279
    %p281 = scmp.eq.s32.totalorder %s21, 0
    %p282 = por %p280, %p281
    %p283 = scmp.le.s32.totalorder 1, %s15
    %p284 = scmp.lt.s32.totalorder %s15, 3
    %p285 = pnand %p283, %p284
    %p286 = pneg %p285
    // Predicated region
    $region9: #{matcher_final_cost_pallas.1} parent=5 // pred_check
      _
    $region10: #{matcher_final_cost_pallas.1} parent=5 // pred_check_branch
      %288 = sbr.rel (%p285) target = $region12
    $region11: #{matcher_final_cost_pallas.1} parent=5 // pred_region
      %s289 = ssub.s32 %s15, 1
    $region12: #{matcher_final_cost_pallas.1} parent=5 // pred_fallthru
      _
    %p290 = scmp.lt.s32.totalorder %s15, 2
    // Predicated region
    $region13: #{matcher_final_cost_pallas.1} parent=5 // pred_check
      %p291 = pneg %p290
    $region14: #{matcher_final_cost_pallas.1} parent=5 // pred_check_branch
      %293 = sbr.rel (%p291) target = $region16
    $region15: #{matcher_final_cost_pallas.1} parent=5 // pred_region
      // Predicated region
      $region17: #{matcher_final_cost_pallas.1} parent=15 // pred_check
        %p294 = pneg %p35
      $region18: #{matcher_final_cost_pallas.1} parent=15 // pred_check_branch
        %296 = sbr.rel (%p294) target = $region20
      $region19: #{matcher_final_cost_pallas.1} parent=15 // pred_region
        %p297 = scmp.lt.s32.totalorder %s15, 1
        %s298 = scalar_select %p297, %s15, 1
        %s299 = smul.addr %s298, 2
        %s300 = smul.addr %s299, 8
        %s301 = scalar_lea.vmem %s0, %s300
      $region20: #{matcher_final_cost_pallas.1} parent=15 // pred_fallthru
        _
      // Predicated region
      $region21: #{matcher_final_cost_pallas.1} parent=15 // pred_check
        %p302 = pneg %p61
      $region22: #{matcher_final_cost_pallas.1} parent=15 // pred_check_branch
        %304 = sbr.rel (%p302) target = $region24
      $region23: #{matcher_final_cost_pallas.1} parent=15 // pred_region
        %p305 = scmp.lt.s32.totalorder %s15, 1
        %s306 = scalar_select %p305, %s15, 1
        %s307 = smul.addr %s306, 4
        %s308 = smul.addr %s307, 4
        %s309 = scalar_lea.vmem %s1, %s308
      $region24: #{matcher_final_cost_pallas.1} parent=15 // pred_fallthru
        _
      // Predicated region
      $region25: #{matcher_final_cost_pallas.1} parent=15 // pred_check
        %p310 = pneg %p87
      $region26: #{matcher_final_cost_pallas.1} parent=15 // pred_check_branch
        %312 = sbr.rel (%p310) target = $region28
      $region27: #{matcher_final_cost_pallas.1} parent=15 // pred_region
        %p313 = scmp.lt.s32.totalorder %s15, 1
        %s314 = scalar_select %p313, %s15, 1
        %s315 = smul.addr %s314, 2
        %s316 = smul.addr %s315, 8
        %s317 = scalar_lea.vmem %s2, %s316
      $region28: #{matcher_final_cost_pallas.1} parent=15 // pred_fallthru
        _
      // Predicated region
      $region29: #{matcher_final_cost_pallas.1} parent=15 // pred_check
        %p318 = pneg %p113
      $region30: #{matcher_final_cost_pallas.1} parent=15 // pred_check_branch
        %320 = sbr.rel (%p318) target = $region32
      $region31: #{matcher_final_cost_pallas.1} parent=15 // pred_region
        %p321 = scmp.lt.s32.totalorder %s15, 1
        %s322 = scalar_select %p321, %s15, 1
        %s323 = smul.addr %s322, 2
        %s324 = smul.addr %s323, 4
        %s325 = scalar_lea.vmem %s3, %s324
      $region32: #{matcher_final_cost_pallas.1} parent=15 // pred_fallthru
        _
      // Predicated region
      $region33: #{matcher_final_cost_pallas.1} parent=15 // pred_check
        %p326 = pneg %p139
      $region34: #{matcher_final_cost_pallas.1} parent=15 // pred_check_branch
        %328 = sbr.rel (%p326) target = $region36
      $region35: #{matcher_final_cost_pallas.1} parent=15 // pred_region
        %p329 = scmp.lt.s32.totalorder %s15, 1
        %s330 = scalar_select %p329, %s15, 1
        %s331 = smul.addr %s330, 2
        %s332 = smul.addr %s331, 4
        %s333 = scalar_lea.vmem %s4, %s332
      $region36: #{matcher_final_cost_pallas.1} parent=15 // pred_fallthru
        _
      // Predicated region
      $region37: #{matcher_final_cost_pallas.1} parent=15 // pred_check
        %p334 = pneg %p165
      $region38: #{matcher_final_cost_pallas.1} parent=15 // pred_check_branch
        %336 = sbr.rel (%p334) target = $region40
      $region39: #{matcher_final_cost_pallas.1} parent=15 // pred_region
        %p337 = scmp.lt.s32.totalorder %s15, 1
        %s338 = scalar_select %p337, %s15, 1
        %s339 = smul.addr %s338, 2
        %s340 = smul.addr %s339, 4
        %s341 = scalar_lea.vmem %s5, %s340
      $region40: #{matcher_final_cost_pallas.1} parent=15 // pred_fallthru
        _
      // Predicated region
      $region41: #{matcher_final_cost_pallas.1} parent=15 // pred_check
        %p342 = pneg %p191
      $region42: #{matcher_final_cost_pallas.1} parent=15 // pred_check_branch
        %344 = sbr.rel (%p342) target = $region44
      $region43: #{matcher_final_cost_pallas.1} parent=15 // pred_region
        %p345 = scmp.lt.s32.totalorder %s15, 1
        %s346 = scalar_select %p345, %s15, 1
        %s347 = scalar_lea.vmem %s6, %s346
      $region44: #{matcher_final_cost_pallas.1} parent=15 // pred_fallthru
        _
      // Predicated region
      $region45: #{matcher_final_cost_pallas.1} parent=15 // pred_check
        %p348 = pneg %p217
      $region46: #{matcher_final_cost_pallas.1} parent=15 // pred_check_branch
        %350 = sbr.rel (%p348) target = $region48
      $region47: #{matcher_final_cost_pallas.1} parent=15 // pred_region
        %p351 = scmp.lt.s32.totalorder %s15, 1
        %s352 = scalar_select %p351, %s15, 1
        %s353 = scalar_lea.vmem %s7, %s352
      $region48: #{matcher_final_cost_pallas.1} parent=15 // pred_fallthru
        _
      // Predicated region
      $region49: #{matcher_final_cost_pallas.1} parent=15 // pred_check
        %p354 = pneg %p243
      $region50: #{matcher_final_cost_pallas.1} parent=15 // pred_check_branch
        %356 = sbr.rel (%p354) target = $region52
      $region51: #{matcher_final_cost_pallas.1} parent=15 // pred_region
        %p357 = scmp.lt.s32.totalorder %s15, 1
        %s358 = scalar_select %p357, %s15, 1
        %s359 = scalar_lea.vmem %s8, %s358
      $region52: #{matcher_final_cost_pallas.1} parent=15 // pred_fallthru
        _
    $region16: #{matcher_final_cost_pallas.1} parent=5 // pred_fallthru
      _
    %p360 = scmp.le.s32.totalorder 1, %s15
    %p361 = scmp.lt.s32.totalorder %s15, 3
    %p362 = pnand %p360, %p361
    %p363 = pneg %p362
    // Predicated region
    $region53: #{matcher_final_cost_pallas.1} parent=5 // pred_check
      _
    $region54: #{matcher_final_cost_pallas.1} parent=5 // pred_check_branch
      %365 = sbr.rel (%p362) target = $region56
    $region55: #{matcher_final_cost_pallas.1} parent=5 // pred_region
      %s366 = ssub.s32 %s15, 1
      %p367 = scmp.lt.s32.totalorder %s20, 1
      %s368 = scalar_select %p367, %s20, 1
      %s369 = smul.addr %s368, 2
      %s370 = smul.addr %s369, 8
      %s371 = scalar_lea.vmem %s0, %s370
      %p372 = pneg %p41
      %p373 = pneg %p38
      %p374 = scmp.lt.s32.totalorder %s20, 1
      %s375 = scalar_select %p374, %s20, 1
      %s376 = smul.addr %s375, 4
      %s377 = smul.addr %s376, 4
      %s378 = scalar_lea.vmem %s1, %s377
      %p379 = pneg %p67
      %p380 = pneg %p64
      %p381 = scmp.lt.s32.totalorder %s20, 1
      %s382 = scalar_select %p381, %s20, 1
      %s383 = smul.addr %s382, 2
      %s384 = smul.addr %s383, 8
      %s385 = scalar_lea.vmem %s2, %s384
      %p386 = pneg %p93
      %p387 = pneg %p90
      %p388 = scmp.lt.s32.totalorder %s20, 1
      %s389 = scalar_select %p388, %s20, 1
      %s390 = smul.addr %s389, 2
      %s391 = smul.addr %s390, 4
      %s392 = scalar_lea.vmem %s3, %s391
      %p393 = pneg %p119
      %p394 = pneg %p116
      %p395 = scmp.lt.s32.totalorder %s20, 1
      %s396 = scalar_select %p395, %s20, 1
      %s397 = smul.addr %s396, 2
      %s398 = smul.addr %s397, 4
      %s399 = scalar_lea.vmem %s4, %s398
      %p400 = pneg %p145
      %p401 = pneg %p142
      %p402 = scmp.lt.s32.totalorder %s20, 1
      %s403 = scalar_select %p402, %s20, 1
      %s404 = smul.addr %s403, 2
      %s405 = smul.addr %s404, 4
      %s406 = scalar_lea.vmem %s5, %s405
      %p407 = pneg %p171
      %p408 = pneg %p168
      %p409 = scmp.lt.s32.totalorder %s20, 1
      %s410 = scalar_select %p409, %s20, 1
      %s411 = scalar_lea.vmem %s6, %s410
      %p412 = pneg %p197
      %p413 = pneg %p194
      %p414 = scmp.lt.s32.totalorder %s20, 1
      %s415 = scalar_select %p414, %s20, 1
      %s416 = scalar_lea.vmem %s7, %s415
      %p417 = pneg %p223
      %p418 = pneg %p220
      %p419 = scmp.lt.s32.totalorder %s20, 1
      %s420 = scalar_select %p419, %s20, 1
      %s421 = scalar_lea.vmem %s8, %s420
      %p422 = pneg %p249
      %p423 = pneg %p246
      %p424 = pneg %p275
      %p425 = pneg %p272
      %p426 = scmp.lt.s32.totalorder %s20, 1
      %s427 = scalar_select %p426, %s20, 1
      %s428 = smul.addr %s427, 2
      %s429 = smul.addr %s428, 8
      %s430 = scalar_lea.vmem %s9, %s429
      %p431 = scmp.lt.s32.totalorder %s20, 1
      %s432 = scalar_select %p431, %s20, 1
      %s433 = smul.addr %s432, 2
      %s434 = smul.addr %s433, 8
      %s435 = scalar_lea.vmem %s0, %s434
      %p436 = scmp.lt.s32.totalorder %s20, 1
      %s437 = scalar_select %p436, %s20, 1
      %s438 = smul.addr %s437, 4
      %s439 = smul.addr %s438, 4
      %s440 = scalar_lea.vmem %s1, %s439
      %p441 = scmp.lt.s32.totalorder %s20, 1
      %s442 = scalar_select %p441, %s20, 1
      %s443 = smul.addr %s442, 2
      %s444 = smul.addr %s443, 8
      %s445 = scalar_lea.vmem %s2, %s444
      %p446 = scmp.lt.s32.totalorder %s20, 1
      %s447 = scalar_select %p446, %s20, 1
      %s448 = smul.addr %s447, 2
      %s449 = smul.addr %s448, 4
      %s450 = scalar_lea.vmem %s3, %s449
      %p451 = scmp.lt.s32.totalorder %s20, 1
      %s452 = scalar_select %p451, %s20, 1
      %s453 = smul.addr %s452, 2
      %s454 = smul.addr %s453, 4
      %s455 = scalar_lea.vmem %s4, %s454
      %p456 = scmp.lt.s32.totalorder %s20, 1
      %s457 = scalar_select %p456, %s20, 1
      %s458 = smul.addr %s457, 2
      %s459 = smul.addr %s458, 4
      %s460 = scalar_lea.vmem %s5, %s459
      %p461 = scmp.lt.s32.totalorder %s20, 1
      %s462 = scalar_select %p461, %s20, 1
      %s463 = scalar_lea.vmem %s6, %s462
      %p464 = scmp.lt.s32.totalorder %s20, 1
      %s465 = scalar_select %p464, %s20, 1
      %s466 = scalar_lea.vmem %s7, %s465
      %p467 = scmp.lt.s32.totalorder %s20, 1
      %s468 = scalar_select %p467, %s20, 1
      %s469 = scalar_lea.vmem %s8, %s468
      %p470 = scmp.lt.s32.totalorder %s20, 1
      %s471 = scalar_select %p470, %s20, 1
      %s472 = smul.addr %s471, 2
      %s473 = smul.addr %s472, 8
      %s474 = scalar_lea.vmem %s9, %s473
      %v476 = vld [vmem:[%s435] sm:$0xff]
      %v477 = vld [vmem:[%s435 + $0x8] sm:$0xff]
      %v478 = vxor.u32 %v476, 2147483648
      %v479 = vxor.u32 %v477, 2147483648
      %v480 = vmul.f32 %v478, 1.442695
      %v481 = vpow.pop %v480
      %v482 = vmul.f32 %v479, 1.442695
      %v483 = vpow.pop %v482
      %v484 = vadd.f32 %v481, 1.0
      %v485 = vadd.f32 %v483, 1.0
      %v486 = vrcp.pop %v484
      %v487 = vmul.f32 1.0, %v486
      %v488 = vrcp.pop %v485
      %v489 = vmul.f32 1.0, %v488
      %v490 = vsub.f32 1.0, %v487
      %v491 = vsub.f32 1.0, %v489
      %v492 = vmul.f32 %v487, %v487
      %v493 = vmul.f32 %v489, %v489
      %v494 = vmul.f32 %v492, 0.75
      %v495 = vmul.f32 %v493, 0.75
      %v496 = vadd.f32 %v490, 1e-08
      %v497 = vadd.f32 %v491, 1e-08
      %v498 = vlog2.pop %v496
      %v499 = vmul.f32 %v498, 0.6931472
      %v500 = vlog2.pop %v497
      %v501 = vmul.f32 %v500, 0.6931472
      %v502 = vsub.f32 0.0, %v499
      %v503 = vsub.f32 0.0, %v501
      %v504 = vmul.f32 %v494, %v502
      %v505 = vmul.f32 %v495, %v503
      %v506 = vmul.f32 %v490, %v490
      %v507 = vmul.f32 %v491, %v491
      %v508 = vmul.f32 %v506, 0.25
      %v509 = vmul.f32 %v507, 0.25
      %v510 = vadd.f32 %v487, 1e-08
      %v511 = vadd.f32 %v489, 1e-08
      %v512 = vlog2.pop %v510
      %v513 = vmul.f32 %v512, 0.6931472
      %v514 = vlog2.pop %v511
      %v515 = vmul.f32 %v514, 0.6931472
      %v516 = vsub.f32 0.0, %v513
      %v517 = vsub.f32 0.0, %v515
      %v518 = vmul.f32 %v508, %v516
      %v519 = vmul.f32 %v509, %v517
      %v520 = vsub.f32 %v518, %v504
      %v521 = vsub.f32 %v519, %v505
      %v522 = vlaneseq
      %v523 = vshrl.u32 %v522, 7
      %v524 = vadd.s32 %v523, 8
      %v525 = vadd.s32 %v523, 16
      %v526 = vld [vmem:[%s463] sm:$0x1]
      %v527 = vlaneseq
      %v528 = vshrl.u32 %v527, 7
      %v529 = vsub.s32 0, %v528
      %v530 = vrot.slane %v526, %v529
      %vm531 = vcmp.eq.s32.totalorder %v523, %v530
      %vm532 = vcmp.eq.s32.totalorder %v524, %v530
      %vm533 = vcmp.eq.s32.totalorder %v525, %v530
      %v534 = vsel %vm531, 1, 0
      %v535 = vsel %vm532, 1, 0
      %v536 = vsel %vm533, 1, 0
      %v537 = vcvt.s32.f32 %v534
      %v538 = vcvt.s32.f32 %v535
      %v539 = vcvt.s32.f32 %v536
      %v540 = vld [vmem:[%s466] sm:$0x1]
      %v541 = vlaneseq
      %v542 = vshrl.u32 %v541, 7
      %v543 = vsub.s32 0, %v542
      %v544 = vrot.slane %v540, %v543
      %vm545 = vcmp.eq.s32.totalorder %v523, %v544
      %vm546 = vcmp.eq.s32.totalorder %v524, %v544
      %v547 = vsel %vm545, 1, 0
      %v548 = vsel %vm546, 1, 0
      %v549 = vcvt.s32.f32 %v547
      %v550 = vcvt.s32.f32 %v548
      %v551 = vpack.c.bf16 %v550, %v549
      %v552 = vld [vmem:[%s440] sm:$0xf]
      %v553 = vld [vmem:[%s440 + $0x4] sm:$0xf]
      %v554 = vld [vmem:[%s440 + $0x8] sm:$0xf]
      %v555 = vld [vmem:[%s440 + $0xc] sm:$0xf]
      %v560 = vunpack.c.l.b16 %v552
      %v561 = vunpack.c.l.b16 %v553
      %v562 = vunpack.c.l.b16 %v554
      %v563 = vunpack.c.l.b16 %v555
      %v564 = vpack.c.b16 %v561, %v560
      %v565 = vpack.c.b16 %v563, %v562
      %vm566 = vcmask 97280
      %v568 = vsel %vm566, %v564, 0
      %v571 = vsel %vm566, %v565, 0
      %vm573 = vcmask 1045504
      %v575 = vsel %vm573, %v551, 0
      %577 = vmatprep.subr.bf16.mxu0 0
      %578 = vmatpush1.bf16.msra.mxu0 %v575
      %579 = vmatprep.subr.bf16.mxu0 0
      %580 = vmatpush1.bf16.msra.mxu0 0
      %581 = vmatprep.subr.bf16.mxu0 0
      %582 = vmatpush1.bf16.msra.mxu0 0
      %583 = vmatprep.subr.bf16.mxu0 0
      %584 = vmatpush1.bf16.msra.mxu0 0
      %585 = vmatprep.subr.bf16.mxu0 0
      %586 = vmatpush1.bf16.msra.mxu0 0
      %587 = vmatprep.subr.bf16.mxu0 0
      %588 = vmatpush1.bf16.msra.mxu0 0
      %589 = vmatprep.subr.bf16.mxu0 0
      %590 = vmatpush1.bf16.msra.mxu0 0
      %591 = vmatprep.subr.bf16.mxu0 0
      %592 = vmatpush1.bf16.msra.mxu0 0
      %593 = vmatprep.subr.bf16.mxu0 0
      %594 = vmatpush1.bf16.msra.mxu0 0
      %595 = vmatprep.subr.bf16.mxu0 0
      %596 = vmatpush1.bf16.msra.mxu0 0
      %597 = vmatprep.subr.bf16.mxu0 0
      %598 = vmatpush1.bf16.msra.mxu0 0
      %599 = vmatprep.subr.bf16.mxu0 0
      %600 = vmatpush1.bf16.msra.mxu0 0
      %601 = vmatprep.subr.bf16.mxu0 0
      %602 = vmatpush1.bf16.msra.mxu0 0
      %603 = vmatprep.subr.bf16.mxu0 0
      %604 = vmatpush1.bf16.msra.mxu0 0
      %605 = vmatprep.subr.bf16.mxu0 0
      %606 = vmatpush1.bf16.msra.mxu0 0
      %607 = vmatprep.subr.bf16.mxu0 0
      %608 = vmatpush1.bf16.msra.mxu0 0
      %609 = vmatprep.mubr.bf16.mxu0 0
      %610 = vmatmul.mubr.bf16.gmra.mrb[0].mxu0 %v568
      %v611 = vpop.f32.mrb[0].mxu0
      %v612 = vadd.f32 0.0, %v611
      %v613 = vpop.f32.mrb[0].mxu0
      %v614 = vpop.f32.mrb[0].mxu0
      %v615 = vadd.f32 0.0, %v614
      %v616 = vpop.f32.mrb[0].mxu0
      %617 = vmatprep.mubr.bf16.mxu0 0
      %618 = vmatmul.mubr.bf16.gmra.mrb[0].mxu0 %v571
      %v619 = vpop.f32.mrb[0].mxu0
      %v620 = vadd.f32 0.0, %v619
      %v621 = vpop.f32.mrb[0].mxu0
      %v622 = vpop.f32.mrb[0].mxu0
      %v623 = vadd.f32 0.0, %v622
      %v624 = vpop.f32.mrb[0].mxu0
      %625 = vdwg.mxu0
      %v626 = vld [vmem:[%s469] sm:$0x1]
      %v628 = vlaneseq
      %v629 = vshrl.u32 %v628, 7
      %v630 = vsub.s32 0, %v629
      %v631 = vrot.slane %v626, %v630
      %v633 = vsub.f32 %v620, %v631
      %v634 = vsub.f32 %v623, %v631
      %v635 = vand.u32 2147483647, %v633
      %v636 = vand.u32 2147483647, %v634
      %v637 = vmin.f32 %v635, 1.0
      %v638 = vmin.f32 %v636, 1.0
      %v639 = vmul.f32 %v637, 0.5
      %v640 = vmul.f32 %v638, 0.5
      %v641 = vmul.f32 %v639, %v637
      %v642 = vmul.f32 %v640, %v638
      %v643 = vsub.f32 %v635, %v637
      %v644 = vsub.f32 %v636, %v638
      %v645 = vadd.f32 %v641, %v643
      %v646 = vadd.f32 %v642, %v644
      %v647 = vld [vmem:[%s445] sm:$0xff]
      %v648 = vld [vmem:[%s445 + $0x8] sm:$0xff]
      %650 = vset.pattern.permute.xlu0 0
      %651 = vperm.xlu0 %650, %v647
      %v652 = vpop.permute.xlu0 %651
      %655 = vset.pattern.permute.xlu0 0
      %656 = vperm.xlu0 %655, %v648
      %v657 = vpop.permute.xlu0 %656
      %vm659 = vcmask 162816
      %v661 = vsel %vm659, %v520, 0
      %v664 = vsel %vm659, %v521, 0
      %vm666 = vcmask 1043456
      %v668 = vsel %vm666, %v539, 0
      %670 = vmatprep.subr.mxu0 0.0
      %671 = vmatpush1.msra.mxu0 %v537
      %672 = vmatprep.subr.mxu0 0.0
      %673 = vmatpush1.msra.mxu0 %v538
      %674 = vmatprep.subr.mxu0 0.0
      %675 = vmatpush1.msra.mxu0 %v668
      %676 = vmatprep.subr.mxu0 0.0
      %677 = vmatpush1.msra.mxu0 0.0
      %678 = vmatprep.subr.mxu0 0.0
      %679 = vmatpush1.msra.mxu0 0.0
      %680 = vmatprep.subr.mxu0 0.0
      %681 = vmatpush1.msra.mxu0 0.0
      %682 = vmatprep.subr.mxu0 0.0
      %683 = vmatpush1.msra.mxu0 0.0
      %684 = vmatprep.subr.mxu0 0.0
      %685 = vmatpush1.msra.mxu0 0.0
      %686 = vmatprep.subr.mxu0 0.0
      %687 = vmatpush1.msra.mxu0 0.0
      %688 = vmatprep.subr.mxu0 0.0
      %689 = vmatpush1.msra.mxu0 0.0
      %690 = vmatprep.subr.mxu0 0.0
      %691 = vmatpush1.msra.mxu0 0.0
      %692 = vmatprep.subr.mxu0 0.0
      %693 = vmatpush1.msra.mxu0 0.0
      %694 = vmatprep.subr.mxu0 0.0
      %695 = vmatpush1.msra.mxu0 0.0
      %696 = vmatprep.subr.mxu0 0.0
      %697 = vmatpush1.msra.mxu0 0.0
      %698 = vmatprep.subr.mxu0 0.0
      %699 = vmatpush1.msra.mxu0 0.0
      %700 = vmatprep.subr.mxu0 0.0
      %701 = vmatpush1.msra.mxu0 0.0
      %702 = vmatprep.subr.mxu0 0.0
      %703 = vmatpush1.msra.mxu0 0.0
      %704 = vmatprep.subr.mxu0 0.0
      %705 = vmatpush1.msra.mxu0 0.0
      %706 = vmatprep.subr.mxu0 0.0
      %707 = vmatpush1.msra.mxu0 0.0
      %708 = vmatprep.subr.mxu0 0.0
      %709 = vmatpush1.msra.mxu0 0.0
      %710 = vmatprep.subr.mxu0 0.0
      %711 = vmatpush1.msra.mxu0 0.0
      %712 = vmatprep.subr.mxu0 0.0
      %713 = vmatpush1.msra.mxu0 0.0
      %714 = vmatprep.subr.mxu0 0.0
      %715 = vmatpush1.msra.mxu0 0.0
      %716 = vmatprep.subr.mxu0 0.0
      %717 = vmatpush1.msra.mxu0 0.0
      %718 = vmatprep.subr.mxu0 0.0
      %719 = vmatpush1.msra.mxu0 0.0
      %720 = vmatprep.subr.mxu0 0.0
      %721 = vmatpush1.msra.mxu0 0.0
      %722 = vmatprep.subr.mxu0 0.0
      %723 = vmatpush1.msra.mxu0 0.0
      %724 = vmatprep.subr.mxu0 0.0
      %725 = vmatpush1.msra.mxu0 0.0
      %726 = vmatprep.subr.mxu0 0.0
      %727 = vmatpush1.msra.mxu0 0.0
      %728 = vmatprep.subr.mxu0 0.0
      %729 = vmatpush1.msra.mxu0 0.0
      %730 = vmatprep.subr.mxu0 0.0
      %731 = vmatpush1.msra.mxu0 0.0
      %732 = vmatprep.subr.mxu0 0.0
      %733 = vmatpush1.msra.mxu0 0.0
      %734 = vmatprep.mubr.f32.mxu0 0.0
      %735 = vmatmul.mubr.f32.gmra.mrb[0].mxu0 %v661
      %v736 = vpop.f32.mrb[0].mxu0
      %v737 = vadd.f32 %v652, %v736
      %v738 = vpop.f32.mrb[0].mxu0
      %739 = vmatprep.mubr.f32.mxu0 0.0
      %740 = vmatmul.mubr.f32.gmra.mrb[0].mxu0 %v664
      %v741 = vpop.f32.mrb[0].mxu0
      %v742 = vadd.f32 %v657, %v741
      %v743 = vpop.f32.mrb[0].mxu0
      %744 = vdwg.mxu0
      %v745 = vld [vmem:[%s450] sm:$0xf]
      %v746 = vld [vmem:[%s450 + $0x4] sm:$0xf]
      %v747 = vunpack.c.l.bf16 %v745
      %v748 = vunpack.c.l.bf16 %v746
      %v749 = vmul.f32 %v747, 5.0
      %v750 = vmul.f32 %v748, 5.0
      %v751 = vadd.f32 %v737, %v749
      %v752 = vadd.f32 %v742, %v750
      %v753 = vld [vmem:[%s455] sm:$0xf]
      %v754 = vld [vmem:[%s455 + $0x4] sm:$0xf]
      %v755 = vunpack.c.l.bf16 %v753
      %v756 = vunpack.c.l.bf16 %v754
      %v757 = vadd.f32 %v751, %v755
      %v758 = vadd.f32 %v752, %v756
      %v759 = vld [vmem:[%s460] sm:$0xf]
      %v760 = vld [vmem:[%s460 + $0x4] sm:$0xf]
      %v761 = vunpack.c.l.bf16 %v759
      %v762 = vunpack.c.l.bf16 %v760
      %v763 = vmul.f32 %v761, 2.0
      %v764 = vmul.f32 %v762, 2.0
      %v765 = vsub.f32 %v757, %v763
      %v766 = vsub.f32 %v758, %v764
      %v767 = vadd.f32 %v765, %v612
      %v768 = vadd.f32 %v766, %v615
      %v769 = vmul.f32 %v645, 0.5
      %v770 = vmul.f32 %v646, 0.5
      %v771 = vadd.f32 %v767, %v769
      %v772 = vadd.f32 %v768, %v770
      %773 = vst [vmem:[%s474] sm:$0xff] %v771
      %774 = vst [vmem:[%s474 + $0x8] sm:$0xff] %v772
      %p775 = scmp.lt.s32.totalorder %s20, 1
      %s776 = scalar_select %p775, %s20, 1
      %s777 = smul.addr %s776, 2
      %s778 = smul.addr %s777, 8
      %s779 = scalar_lea.vmem %s9, %s778
      // Predicated region
      $region57: #{matcher_final_cost_pallas.1} parent=55 // pred_check
        %p780 = pneg %p272
      $region58: #{matcher_final_cost_pallas.1} parent=55 // pred_check_branch
        %782 = sbr.rel (%p780) target = $region60
      $region59: #{matcher_final_cost_pallas.1} parent=55 // pred_region
        _
      $region60: #{matcher_final_cost_pallas.1} parent=55 // pred_fallthru
        _
    $region56: #{matcher_final_cost_pallas.1} parent=5 // pred_fallthru
      _
    %p783 = scmp.le.s32.totalorder 2, %s15
    // Predicated region
    $region61: #{matcher_final_cost_pallas.1} parent=5 // pred_check
      %p784 = pneg %p783
    $region62: #{matcher_final_cost_pallas.1} parent=5 // pred_check_branch
      %786 = sbr.rel (%p784) target = $region64
    $region63: #{matcher_final_cost_pallas.1} parent=5 // pred_region
      %s787 = ssub.s32 %s15, 2
      // Predicated region
      $region65: #{matcher_final_cost_pallas.1} parent=63 // pred_check
        %p788 = pneg %p278
      $region66: #{matcher_final_cost_pallas.1} parent=63 // pred_check_branch
        %790 = sbr.rel (%p788) target = $region68
      $region67: #{matcher_final_cost_pallas.1} parent=63 // pred_region
        %p791 = scmp.lt.s32.totalorder %s21, 1
        %s792 = scalar_select %p791, %s21, 1
        %s793 = smul.addr %s792, 2
        %s794 = smul.addr %s793, 8
        %s795 = scalar_lea.vmem %s9, %s794
      $region68: #{matcher_final_cost_pallas.1} parent=63 // pred_fallthru
        _
    $region64: #{matcher_final_cost_pallas.1} parent=5 // pred_fallthru
      _
  $region6: #{matcher_final_cost_pallas.1} parent=0 // loop_footer
    %s19 = sadd.s32 1, %s15
  $region7: #{matcher_final_cost_pallas.1} parent=0 // loop_footer_branch
    %14 = sbr.rel target = $region3
  $region8: #{matcher_final_cost_pallas.1} parent=0 // loop_exit
    _

</llo_original>
